<compile_context>
chip_gen: v7x
topology: tpu7x:2x2x1
jax: 0.10.0
libtpu: 0.0.40
codegen_flags: <defaults>
</compile_context>

<pallas_src>
import functools

import jax
import jax.numpy as jnp
from jax.experimental import pallas as pl
from jax.experimental.pallas import tpu as pltpu


def _round_up(x, m):
    return ((x + m - 1) // m) * m


def _vmem_limit_bytes():
    """Per-generation VMEM limit with headroom (75% of physical capacity)."""
    try:
        cap = pltpu.get_tpu_info().vmem_capacity_bytes
    except Exception:
        cap = 128 << 20  # v5e/v6e default physical capacity
    return int(cap * 0.75)  # 96 MiB on v5e/v6e, 48 MiB on v7x


def _pick_bm(batch):
    """Batch tile: 256 on 256-wide MXU generations (v6e/v7x) for big batches,
    otherwise <=128 (sublane-aligned for small batches)."""
    try:
        kind = jax.devices()[0].device_kind.lower()
        narrow_mxu = any(v in kind for v in ("v2", "v3", "v4", "v5"))
    except Exception:
        narrow_mxu = False
    if (not narrow_mxu) and batch >= 256:
        return 256
    return min(128, _round_up(max(batch, 1), 8))


# ----------------------------------------------------------------------------
# Fast path: W fully resident in VMEM, no reduction axis.
#   grid = (B_pad // bm,)                  axis: batch ("parallel")
#   x_ref: (bm, D_pad) f32   w_ref: (D_pad, N_pad) bf16   b_ref: (1, N_pad) f32
#   o_ref: (bm, N_pad) f32
# ----------------------------------------------------------------------------
def _linear_resident_kernel(x_ref, w_ref, b_ref, o_ref):
    x_bf = x_ref[...].astype(jnp.bfloat16)  # in-kernel cast (VPU filler)
    o_ref[...] = (
        jnp.dot(x_bf, w_ref[...], preferred_element_type=jnp.float32) + b_ref[...]
    ).astype(o_ref.dtype)


# ----------------------------------------------------------------------------
# Fallback: K-tiled reduction, accumulating into the resident output block.
#   grid = (B_pad // bm, D_pad // tk)      axes: (batch "parallel", K "arbitrary")
#   x_ref: (bm, tk) f32   w_ref: (tk, N_pad) bf16   b_ref: (1, N_pad) f32
#   o_ref: (bm, N_pad) f32  (same block across k -> resident accumulator)
# ----------------------------------------------------------------------------
def _linear_ktiled_kernel(x_ref, w_ref, b_ref, o_ref):
    k = pl.program_id(1)
    partial = jnp.dot(
        x_ref[...].astype(jnp.bfloat16), w_ref[...],
        preferred_element_type=jnp.float32,
    )

    @pl.when(k == 0)
    def _():
        o_ref[...] = partial + b_ref[...]

    @pl.when(k > 0)
    def _():
        o_ref[...] = o_ref[...] + partial


@functools.partial(jax.jit, static_argnames=("n_out",))
def pallas_linear(x_flat, w_pad, b_pad, n_out):
    """logits = x_flat @ W + b.  x_flat is f32 (B, D); w_pad is pre-padded
    (D_pad, N_pad) bf16; b_pad is (1, N_pad) f32 (padding done once at init)."""
    B, D = x_flat.shape
    D_pad, N_pad = w_pad.shape
    assert D <= D_pad and D_pad % 128 == 0 and N_pad % 128 == 0

    vmem_limit = _vmem_limit_bytes()
    budget = int(vmem_limit * 0.85)          # planning headroom inside the limit

    bm = _pick_bm(B)
    B_pad = _round_up(B, bm)
    nb = B_pad // bm

    # Pad x rows to the batch tile / cols to D_pad only when needed (f32, one op).
    pad_rows, pad_cols = B_pad - B, D_pad - D
    if pad_rows or pad_cols:
        x_flat = jnp.pad(x_flat, ((0, pad_rows), (0, pad_cols)))

    w_bytes = D_pad * N_pad * 2                      # bf16, resident (single buffer)
    x_blk = bm * D_pad * 4                           # f32, double-buffered
    o_blk = bm * N_pad * 4                           # f32, double-buffered
    bias = N_pad * 4 * 2
    resident_cost = w_bytes + 2 * x_blk + 2 * o_blk + bias

    if resident_cost <= budget:
        # -------- resident-W fast path: pure x-streaming, no reduction axis --------
        out = pl.pallas_call(
            _linear_resident_kernel,
            out_shape=jax.ShapeDtypeStruct((B_pad, N_pad), jnp.float32),
            grid_spec=pltpu.PrefetchScalarGridSpec(
                num_scalar_prefetch=0,
                grid=(nb,),
                in_specs=[
                    pl.BlockSpec((bm, D_pad), lambda i: (i, 0)),       # x tile
                    pl.BlockSpec((D_pad, N_pad), lambda i: (0, 0)),    # W (resident)
                    pl.BlockSpec((1, N_pad), lambda i: (0, 0)),        # bias
                ],
                out_specs=pl.BlockSpec((bm, N_pad), lambda i: (i, 0)),
            ),
            compiler_params=pltpu.CompilerParams(
                dimension_semantics=("parallel",),
                vmem_limit_bytes=vmem_limit,
            ),
        )(x_flat, w_pad, b_pad)
    else:
        # -------- K-tiled fallback for large D: adaptive tk, output-resident acc ----
        def fits(tk_):
            return (2 * bm * tk_ * 4 + 2 * tk_ * N_pad * 2
                    + 2 * o_blk + bias) <= budget

        candidates = [t for t in (D_pad, 4096, 2048, 1024, 512, 256, 128)
                      if t <= D_pad and D_pad % t == 0 and fits(t)]
        tk = max(candidates) if candidates else 128
        nk = D_pad // tk

        out = pl.pallas_call(
            _linear_ktiled_kernel,
            out_shape=jax.ShapeDtypeStruct((B_pad, N_pad), jnp.float32),
            grid_spec=pltpu.PrefetchScalarGridSpec(
                num_scalar_prefetch=0,
                grid=(nb, nk),
                in_specs=[
                    pl.BlockSpec((bm, tk), lambda i, k: (i, k)),       # x K-tile
                    pl.BlockSpec((tk, N_pad), lambda i, k: (k, 0)),    # W K-tile
                    pl.BlockSpec((1, N_pad), lambda i, k: (0, 0)),     # bias
                ],
                out_specs=pl.BlockSpec((bm, N_pad), lambda i, k: (i, 0)),
            ),
            compiler_params=pltpu.CompilerParams(
                dimension_semantics=("parallel", "arbitrary"),
                vmem_limit_bytes=vmem_limit,
            ),
        )(x_flat, w_pad, b_pad)

    return out[:B, :n_out]


# ----------------------------------------------------------------------------
# Wrapped "model": deterministic linear classifier whose matmul runs in Pallas.
# Padding/casting of W and b is done ONCE here (not per forward call).
# ----------------------------------------------------------------------------
class LinearModel:
    def __init__(self, in_features, num_classes, key):
        kw, kb = jax.random.split(key)
        w_f32 = (jax.random.normal(kw, (in_features, num_classes), jnp.float32)
                 * (1.0 / jnp.sqrt(in_features)))
        b_f32 = jax.random.normal(kb, (num_classes,), jnp.float32) * 0.01

        self.in_features = in_features
        self.num_classes = num_classes
        d_pad = _round_up(in_features, 128)
        n_pad = _round_up(num_classes, 128)

        # Hoisted, lane-dense, MXU-native storage: bf16 W, f32 bias.
        self.w_pad = (jnp.zeros((d_pad, n_pad), jnp.bfloat16)
                      .at[:in_features, :num_classes].set(w_f32.astype(jnp.bfloat16)))
        self.b_pad = (jnp.zeros((1, n_pad), jnp.float32)
                      .at[0, :num_classes].set(b_f32))

    def __call__(self, x_nchw):
        B = x_nchw.shape[0]
        x_flat = x_nchw.reshape(B, -1)          # == torch .view(B, -1), row-major
        return pallas_linear(x_flat, self.w_pad, self.b_pad, self.num_classes)


# ----------------------------------------------------------------------------
# FeatureAttrMethod: faithful port of the abstract base class.
# ----------------------------------------------------------------------------
class FeatureAttrMethod:
    """Explanation methods that create feature attributions should follow
    this signature."""

    def __init__(self, model):
        self.model = model

    def __call__(self, x, t, **kwargs):
        return self.forward(x, t, **kwargs)

    def forward(self, x, t, **kwargs):
        # TODO(synk): base class forward is abstract in PyTorch (no compute to port);
        # concrete subclasses supply the attribution logic.
        raise NotImplementedError()


if __name__ == "__main__":
    key = jax.random.PRNGKey(0)
    kx, kmodel = jax.random.split(key)

    B, C, H, W = 2, 4, 16, 16
    NUM_CLASSES = 16

    x = jax.random.normal(kx, (B, C, H, W), jnp.float32)     # NCHW, like PyTorch
    t = jnp.arange(B, dtype=jnp.int32) % NUM_CLASSES          # target labels

    model = LinearModel(C * H * W, NUM_CLASSES, kmodel)
    attr_method = FeatureAttrMethod(model)

    # Run the wrapped model's Pallas hot path (the only compute reachable via this
    # module) and block on the result.
    logits = jax.block_until_ready(attr_method.model(x))

    # Numerical check against a plain-JAX bf16-operand / f32-accumulate reference.
    D = C * H * W
    x_bf = x.reshape(B, -1).astype(jnp.bfloat16).astype(jnp.float32)
    w_bf = model.w_pad[:D, :NUM_CLASSES].astype(jnp.float32)
    b_f = model.b_pad[0, :NUM_CLASSES]
    ref = x_bf @ w_bf + b_f
    assert logits.shape == (B, NUM_CLASSES)
    assert jnp.allclose(logits, ref, atol=1e-2, rtol=1e-2), (
        f"max abs err {jnp.max(jnp.abs(logits - ref))}")

    # Verify the abstract forward semantics are preserved exactly.
    raised = False
    try:
        attr_method(x, t)
    except NotImplementedError:
        raised = True
    assert raised, "FeatureAttrMethod.forward must raise NotImplementedError"

    print("KERNEL_OK")
</pallas_src>

<mosaic_0001>
module attributes {stable_mosaic.version = 11 : i64} {
  func.func @_linear_resident_kernel(%arg0: i32, %arg1: memref<8x1024xf32, #tpu.memory_space<vmem>>, %arg2: memref<1024x128xbf16, #tpu.memory_space<vmem>>, %arg3: memref<1x128xf32, #tpu.memory_space<vmem>>, %arg4: memref<8x128xf32, #tpu.memory_space<vmem>>) attributes {dimension_semantics = [#tpu.dimension_semantics<parallel>], iteration_bounds = array<i64: 1>, scalar_prefetch = 0 : i64, scratch_operands = 0 : i64, tpu.core_type = #tpu.core_type<tc>, window_params = [{transform_indices = @transform_0, window_bounds = array<i64: 8, 1024>}, {pipeline_mode = #tpu.pipeline_mode<synchronous>, transform_indices = @transform_1, window_bounds = array<i64: 1024, 128>}, {pipeline_mode = #tpu.pipeline_mode<synchronous>, transform_indices = @transform_2, window_bounds = array<i64: 1, 128>}, {transform_indices = @transform_3, window_bounds = array<i64: 8, 128>}]} {
    %c0 = arith.constant 0 : index
    %c0_0 = arith.constant 0 : index
    %0 = vector.load %arg1[%c0, %c0_0] : memref<8x1024xf32, #tpu.memory_space<vmem>>, vector<8x1024xf32>
    %1 = arith.truncf %0 : vector<8x1024xf32> to vector<8x1024xbf16>
    %c0_1 = arith.constant 0 : index
    %c0_2 = arith.constant 0 : index
    %2 = vector.load %arg2[%c0_1, %c0_2] : memref<1024x128xbf16, #tpu.memory_space<vmem>>, vector<1024x128xbf16>
    %cst = arith.constant dense<0.000000e+00> : vector<8x128xf32>
    %3 = tpu.matmul %1, %2, %cst {dimension_numbers = #tpu.dot_dimension_numbers<[1], [0], [0], [1], [0, 0, 1, 1], [], []>} : vector<8x1024xbf16>, vector<1024x128xbf16>, vector<8x128xf32> -> vector<8x128xf32>
    %c0_3 = arith.constant 0 : index
    %c0_4 = arith.constant 0 : index
    %4 = vector.load %arg3[%c0_3, %c0_4] : memref<1x128xf32, #tpu.memory_space<vmem>>, vector<1x128xf32>
    %5 = vector.broadcast %4 : vector<1x128xf32> to vector<8x128xf32>
    %6 = arith.addf %3, %5 : vector<8x128xf32>
    %c0_5 = arith.constant 0 : index
    %c0_6 = arith.constant 0 : index
    %7 = vector.load %arg4[%c0_5, %c0_6] : memref<8x128xf32, #tpu.memory_space<vmem>>, vector<8x128xf32>
    tpu.vector_store %arg4[%c0_5, %c0_6], %6 {strides = array<i32>} : memref<8x128xf32, #tpu.memory_space<vmem>>, vector<8x128xf32>,
    return
  }
  func.func @transform_0(%arg0: i32) -> (i32, i32) {
    %c0_i32 = arith.constant 0 : i32
    %c0_i32_0 = arith.constant 0 : i32
    return %arg0, %c0_i32 : i32, i32
  }
  func.func @transform_1(%arg0: i32) -> (i32, i32) {
    %c0_i32 = arith.constant 0 : i32
    %c0_i32_0 = arith.constant 0 : i32
    %c0_i32_1 = arith.constant 0 : i32
    return %c0_i32, %c0_i32_0 : i32, i32
  }
  func.func @transform_2(%arg0: i32) -> (i32, i32) {
    %c0_i32 = arith.constant 0 : i32
    %c0_i32_0 = arith.constant 0 : i32
    %c0_i32_1 = arith.constant 0 : i32
    return %c0_i32, %c0_i32_0 : i32, i32
  }
  func.func @transform_3(%arg0: i32) -> (i32, i32) {
    %c0_i32 = arith.constant 0 : i32
    %c0_i32_0 = arith.constant 0 : i32
    return %arg0, %c0_i32 : i32, i32
  }
}

</mosaic_0001>

<llo_original>
// kernel: pallas_linear.1
$region0: #{pallas_linear.1}
  #allocation0 [shape = 'u32[]', space=smem, size = 0x4, offset = 0x4, fixed_abs, tag = 'smem constant byte address 0x4 - core index']
  #allocation1 [shape = 'u32[144,128]{1,0:T(1,128)}', space=vmem, size = 0x12000, scoped, tag = 'internal scratch']
  %s0 = inlined_call_operand.hbm [shape: f32[8,1024], index: 0, kind: input, shape index: {}]
  %s1 = inlined_call_operand.hbm [shape: bf16[1024,128], index: 1, kind: input, shape index: {}]
  %s2 = inlined_call_operand.hbm [shape: f32[1,128], index: 2, kind: input, shape index: {}]
  %s3 = inlined_call_operand.hbm [shape: f32[8,128], index: 3, kind: output, shape index: {}]
  %s4 = sld [smem:[#allocation0]]
  $region34: #{pallas_linear.1} parent=0
    _
  %s6 = ssub.s32 1, %s4
  %s7 = scalar_select 0, %s6, %s4
  $region1: #{pallas_linear.1} parent=0
    #allocation2 [shape = 'u8[32768]{0}', space=vmem, size = 0x8000, scoped, tag = 'input window, operand 0, single buffered']
    #allocation3 [shape = 's32[1]{0}', space=sflag, size = 0x4, scoped, tag = 'scoped memory for pallas_linear.1']
    #allocation4 [shape = 's32[1]{0}', space=sflag, size = 0x4, scoped, tag = 'scoped memory for pallas_linear.1']
    #allocation5 [shape = 'u8[262144]{0}', space=vmem, size = 0x40000, scoped, tag = 'input window, operand 1, single buffered']
    #allocation6 [shape = 's32[1]{0}', space=sflag, size = 0x4, scoped, tag = 'scoped memory for pallas_linear.1']
    #allocation7 [shape = 'u8[512]{0}', space=vmem, size = 0x400, scoped, tag = 'input window, operand 2, single buffered']
    #allocation8 [shape = 'u8[4096]{0}', space=vmem, size = 0x1000, scoped, tag = 'output window, operand 0, single buffered']
    %8 = vsyncpa [#allocation3], 0
    %9 = vsyncpa [#allocation6], 0
    %10 = vsyncpa [#allocation4], 0
    // Predicated region
    $region2: #{pallas_linear.1} parent=1 // pred_check
      _
    $region3: #{pallas_linear.1} parent=1 // pred_check_branch
      %12 = sbr.rel (0) target = $region5
    $region4: #{pallas_linear.1} parent=1 // pred_region
      %s14 = ssub.s32 1024, 1024
      %15 = vsyncadd [#allocation3], %s14
      %s17 = sshll.u32 [#allocation2], 4
      %s18 = int_to_ptr.vmem [resolvable:$true] %s17
      %20 = dma.hbm_to_vmem [thread:$0]  %s0, 1024, %s18, [#allocation3]
    $region5: #{pallas_linear.1} parent=1 // pred_fallthru
      _
    // Predicated region
    $region6: #{pallas_linear.1} parent=1 // pred_check
      _
    $region7: #{pallas_linear.1} parent=1 // pred_check_branch
      %22 = sbr.rel (0) target = $region9
    $region8: #{pallas_linear.1} parent=1 // pred_region
      %s24 = ssub.s32 8192, 8192
      %25 = vsyncadd [#allocation6], %s24
      %s26 = sshll.u32 [#allocation5], 4
      %s27 = int_to_ptr.vmem [resolvable:$true] %s26
      %32 = dma.hbm_to_vmem [thread:$0]  %s1, 8192, %s27, [#allocation6], 64, 64, 4
    $region9: #{pallas_linear.1} parent=1 // pred_fallthru
      _
    // Predicated region
    $region10: #{pallas_linear.1} parent=1 // pred_check
      _
    $region11: #{pallas_linear.1} parent=1 // pred_check_branch
      %34 = sbr.rel (0) target = $region13
    $region12: #{pallas_linear.1} parent=1 // pred_region
      %s36 = ssub.s32 16, 16
      %37 = vsyncadd [#allocation6], %s36
      %s39 = sshll.u32 [#allocation7], 4
      %s40 = int_to_ptr.vmem [resolvable:$true] %s39
      %42 = dma.hbm_to_vmem [thread:$0]  %s2, 16, %s40, [#allocation6]
    $region13: #{pallas_linear.1} parent=1 // pred_fallthru
      _
    // Predicated region
    $region14: #{pallas_linear.1} parent=1 // pred_check
      _
    $region15: #{pallas_linear.1} parent=1 // pred_check_branch
      %44 = sbr.rel (0) target = $region17
    $region16: #{pallas_linear.1} parent=1 // pred_region
      %45 = dma.done [#allocation3], 1024
    $region17: #{pallas_linear.1} parent=1 // pred_fallthru
      _
    // Predicated region
    $region18: #{pallas_linear.1} parent=1 // pred_check
      _
    $region19: #{pallas_linear.1} parent=1 // pred_check_branch
      %47 = sbr.rel (0) target = $region21
    $region20: #{pallas_linear.1} parent=1 // pred_region
      %48 = dma.done [#allocation6], 8192
    $region21: #{pallas_linear.1} parent=1 // pred_fallthru
      _
    // Predicated region
    $region22: #{pallas_linear.1} parent=1 // pred_check
      _
    $region23: #{pallas_linear.1} parent=1 // pred_check_branch
      %50 = sbr.rel (0) target = $region25
    $region24: #{pallas_linear.1} parent=1 // pred_region
      %51 = dma.done [#allocation6], 16
    $region25: #{pallas_linear.1} parent=1 // pred_fallthru
      _
    %v53 = vld [vmem:[#allocation2] sm:$0xff]
    %v54 = vld [vmem:[#allocation2 + $0x8] sm:$0xff]
    %v55 = vld [vmem:[#allocation2 + $0x10] sm:$0xff]
    %v56 = vld [vmem:[#allocation2 + $0x18] sm:$0xff]
    %v57 = vld [vmem:[#allocation2 + $0x20] sm:$0xff]
    %v58 = vld [vmem:[#allocation2 + $0x28] sm:$0xff]
    %v59 = vld [vmem:[#allocation2 + $0x30] sm:$0xff]
    %v60 = vld [vmem:[#allocation2 + $0x38] sm:$0xff]
    %v61 = vpack.c.bf16 %v53, %v53
    %v62 = vpack.c.bf16 %v54, %v54
    %v63 = vpack.c.bf16 %v55, %v55
    %v64 = vpack.c.bf16 %v56, %v56
    %v65 = vpack.c.bf16 %v57, %v57
    %v66 = vpack.c.bf16 %v58, %v58
    %v67 = vpack.c.bf16 %v59, %v59
    %v68 = vpack.c.bf16 %v60, %v60
    %v69 = vld [vmem:[#allocation5] sm:$0xf]
    %v70 = vld [vmem:[#allocation5 + $0x4] sm:$0xf]
    %v71 = vld [vmem:[#allocation5 + $0x8] sm:$0xf]
    %v72 = vld [vmem:[#allocation5 + $0xc] sm:$0xf]
    %v73 = vld [vmem:[#allocation5 + $0x10] sm:$0xf]
    %v74 = vld [vmem:[#allocation5 + $0x14] sm:$0xf]
    %v75 = vld [vmem:[#allocation5 + $0x18] sm:$0xf]
    %v76 = vld [vmem:[#allocation5 + $0x1c] sm:$0xf]
    %v77 = vld [vmem:[#allocation5 + $0x20] sm:$0xf]
    %v78 = vld [vmem:[#allocation5 + $0x24] sm:$0xf]
    %v79 = vld [vmem:[#allocation5 + $0x28] sm:$0xf]
    %v80 = vld [vmem:[#allocation5 + $0x2c] sm:$0xf]
    %v81 = vld [vmem:[#allocation5 + $0x30] sm:$0xf]
    %v82 = vld [vmem:[#allocation5 + $0x34] sm:$0xf]
    %v83 = vld [vmem:[#allocation5 + $0x38] sm:$0xf]
    %v84 = vld [vmem:[#allocation5 + $0x3c] sm:$0xf]
    %v85 = vld [vmem:[#allocation5 + $0x40] sm:$0xf]
    %v86 = vld [vmem:[#allocation5 + $0x44] sm:$0xf]
    %v87 = vld [vmem:[#allocation5 + $0x48] sm:$0xf]
    %v88 = vld [vmem:[#allocation5 + $0x4c] sm:$0xf]
    %v89 = vld [vmem:[#allocation5 + $0x50] sm:$0xf]
    %v90 = vld [vmem:[#allocation5 + $0x54] sm:$0xf]
    %v91 = vld [vmem:[#allocation5 + $0x58] sm:$0xf]
    %v92 = vld [vmem:[#allocation5 + $0x5c] sm:$0xf]
    %v93 = vld [vmem:[#allocation5 + $0x60] sm:$0xf]
    %v94 = vld [vmem:[#allocation5 + $0x64] sm:$0xf]
    %v95 = vld [vmem:[#allocation5 + $0x68] sm:$0xf]
    %v96 = vld [vmem:[#allocation5 + $0x6c] sm:$0xf]
    %v97 = vld [vmem:[#allocation5 + $0x70] sm:$0xf]
    %v98 = vld [vmem:[#allocation5 + $0x74] sm:$0xf]
    %v99 = vld [vmem:[#allocation5 + $0x78] sm:$0xf]
    %v100 = vld [vmem:[#allocation5 + $0x7c] sm:$0xf]
    %v101 = vld [vmem:[#allocation5 + $0x80] sm:$0xf]
    %v102 = vld [vmem:[#allocation5 + $0x84] sm:$0xf]
    %v103 = vld [vmem:[#allocation5 + $0x88] sm:$0xf]
    %v104 = vld [vmem:[#allocation5 + $0x8c] sm:$0xf]
    %v105 = vld [vmem:[#allocation5 + $0x90] sm:$0xf]
    %v106 = vld [vmem:[#allocation5 + $0x94] sm:$0xf]
    %v107 = vld [vmem:[#allocation5 + $0x98] sm:$0xf]
    %v108 = vld [vmem:[#allocation5 + $0x9c] sm:$0xf]
    %v109 = vld [vmem:[#allocation5 + $0xa0] sm:$0xf]
    %v110 = vld [vmem:[#allocation5 + $0xa4] sm:$0xf]
    %v111 = vld [vmem:[#allocation5 + $0xa8] sm:$0xf]
    %v112 = vld [vmem:[#allocation5 + $0xac] sm:$0xf]
    %v113 = vld [vmem:[#allocation5 + $0xb0] sm:$0xf]
    %v114 = vld [vmem:[#allocation5 + $0xb4] sm:$0xf]
    %v115 = vld [vmem:[#allocation5 + $0xb8] sm:$0xf]
    %v116 = vld [vmem:[#allocation5 + $0xbc] sm:$0xf]
    %v117 = vld [vmem:[#allocation5 + $0xc0] sm:$0xf]
    %v118 = vld [vmem:[#allocation5 + $0xc4] sm:$0xf]
    %v119 = vld [vmem:[#allocation5 + $0xc8] sm:$0xf]
    %v120 = vld [vmem:[#allocation5 + $0xcc] sm:$0xf]
    %v121 = vld [vmem:[#allocation5 + $0xd0] sm:$0xf]
    %v122 = vld [vmem:[#allocation5 + $0xd4] sm:$0xf]
    %v123 = vld [vmem:[#allocation5 + $0xd8] sm:$0xf]
    %v124 = vld [vmem:[#allocation5 + $0xdc] sm:$0xf]
    %v125 = vld [vmem:[#allocation5 + $0xe0] sm:$0xf]
    %v126 = vld [vmem:[#allocation5 + $0xe4] sm:$0xf]
    %v127 = vld [vmem:[#allocation5 + $0xe8] sm:$0xf]
    %v128 = vld [vmem:[#allocation5 + $0xec] sm:$0xf]
    %v129 = vld [vmem:[#allocation5 + $0xf0] sm:$0xf]
    %v130 = vld [vmem:[#allocation5 + $0xf4] sm:$0xf]
    %v131 = vld [vmem:[#allocation5 + $0xf8] sm:$0xf]
    %v132 = vld [vmem:[#allocation5 + $0xfc] sm:$0xf]
    %v133 = vld [vmem:[#allocation5 + $0x100] sm:$0xf]
    %v134 = vld [vmem:[#allocation5 + $0x104] sm:$0xf]
    %v135 = vld [vmem:[#allocation5 + $0x108] sm:$0xf]
    %v136 = vld [vmem:[#allocation5 + $0x10c] sm:$0xf]
    %v137 = vld [vmem:[#allocation5 + $0x110] sm:$0xf]
    %v138 = vld [vmem:[#allocation5 + $0x114] sm:$0xf]
    %v139 = vld [vmem:[#allocation5 + $0x118] sm:$0xf]
    %v140 = vld [vmem:[#allocation5 + $0x11c] sm:$0xf]
    %v141 = vld [vmem:[#allocation5 + $0x120] sm:$0xf]
    %v142 = vld [vmem:[#allocation5 + $0x124] sm:$0xf]
    %v143 = vld [vmem:[#allocation5 + $0x128] sm:$0xf]
    %v144 = vld [vmem:[#allocation5 + $0x12c] sm:$0xf]
    %v145 = vld [vmem:[#allocation5 + $0x130] sm:$0xf]
    %v146 = vld [vmem:[#allocation5 + $0x134] sm:$0xf]
    %v147 = vld [vmem:[#allocation5 + $0x138] sm:$0xf]
    %v148 = vld [vmem:[#allocation5 + $0x13c] sm:$0xf]
    %v149 = vld [vmem:[#allocation5 + $0x140] sm:$0xf]
    %v150 = vld [vmem:[#allocation5 + $0x144] sm:$0xf]
    %v151 = vld [vmem:[#allocation5 + $0x148] sm:$0xf]
    %v152 = vld [vmem:[#allocation5 + $0x14c] sm:$0xf]
    %v153 = vld [vmem:[#allocation5 + $0x150] sm:$0xf]
    %v154 = vld [vmem:[#allocation5 + $0x154] sm:$0xf]
    %v155 = vld [vmem:[#allocation5 + $0x158] sm:$0xf]
    %v156 = vld [vmem:[#allocation5 + $0x15c] sm:$0xf]
    %v157 = vld [vmem:[#allocation5 + $0x160] sm:$0xf]
    %v158 = vld [vmem:[#allocation5 + $0x164] sm:$0xf]
    %v159 = vld [vmem:[#allocation5 + $0x168] sm:$0xf]
    %v160 = vld [vmem:[#allocation5 + $0x16c] sm:$0xf]
    %v161 = vld [vmem:[#allocation5 + $0x170] sm:$0xf]
    %v162 = vld [vmem:[#allocation5 + $0x174] sm:$0xf]
    %v163 = vld [vmem:[#allocation5 + $0x178] sm:$0xf]
    %v164 = vld [vmem:[#allocation5 + $0x17c] sm:$0xf]
    %v165 = vld [vmem:[#allocation5 + $0x180] sm:$0xf]
    %v166 = vld [vmem:[#allocation5 + $0x184] sm:$0xf]
    %v167 = vld [vmem:[#allocation5 + $0x188] sm:$0xf]
    %v168 = vld [vmem:[#allocation5 + $0x18c] sm:$0xf]
    %v169 = vld [vmem:[#allocation5 + $0x190] sm:$0xf]
    %v170 = vld [vmem:[#allocation5 + $0x194] sm:$0xf]
    %v171 = vld [vmem:[#allocation5 + $0x198] sm:$0xf]
    %v172 = vld [vmem:[#allocation5 + $0x19c] sm:$0xf]
    %v173 = vld [vmem:[#allocation5 + $0x1a0] sm:$0xf]
    %v174 = vld [vmem:[#allocation5 + $0x1a4] sm:$0xf]
    %v175 = vld [vmem:[#allocation5 + $0x1a8] sm:$0xf]
    %v176 = vld [vmem:[#allocation5 + $0x1ac] sm:$0xf]
    %v177 = vld [vmem:[#allocation5 + $0x1b0] sm:$0xf]
    %v178 = vld [vmem:[#allocation5 + $0x1b4] sm:$0xf]
    %v179 = vld [vmem:[#allocation5 + $0x1b8] sm:$0xf]
    %v180 = vld [vmem:[#allocation5 + $0x1bc] sm:$0xf]
    %v181 = vld [vmem:[#allocation5 + $0x1c0] sm:$0xf]
    %v182 = vld [vmem:[#allocation5 + $0x1c4] sm:$0xf]
    %v183 = vld [vmem:[#allocation5 + $0x1c8] sm:$0xf]
    %v184 = vld [vmem:[#allocation5 + $0x1cc] sm:$0xf]
    %v185 = vld [vmem:[#allocation5 + $0x1d0] sm:$0xf]
    %v186 = vld [vmem:[#allocation5 + $0x1d4] sm:$0xf]
    %v187 = vld [vmem:[#allocation5 + $0x1d8] sm:$0xf]
    %v188 = vld [vmem:[#allocation5 + $0x1dc] sm:$0xf]
    %v189 = vld [vmem:[#allocation5 + $0x1e0] sm:$0xf]
    %v190 = vld [vmem:[#allocation5 + $0x1e4] sm:$0xf]
    %v191 = vld [vmem:[#allocation5 + $0x1e8] sm:$0xf]
    %v192 = vld [vmem:[#allocation5 + $0x1ec] sm:$0xf]
    %v193 = vld [vmem:[#allocation5 + $0x1f0] sm:$0xf]
    %v194 = vld [vmem:[#allocation5 + $0x1f4] sm:$0xf]
    %v195 = vld [vmem:[#allocation5 + $0x1f8] sm:$0xf]
    %v196 = vld [vmem:[#allocation5 + $0x1fc] sm:$0xf]
    %v197 = vld [vmem:[#allocation7] sm:$0x1]
    %v199 = vlaneseq
    %v200 = vshrl.u32 %v199, 7
    %v201 = vsub.s32 0, %v200
    %v202 = vrot.slane %v197, %v201
    %v332 = vunpack.c.l.b16 %v69
    %v333 = vunpack.c.l.b16 %v70
    %v334 = vunpack.c.l.b16 %v71
    %v335 = vunpack.c.l.b16 %v72
    %v336 = vunpack.c.l.b16 %v73
    %v337 = vunpack.c.l.b16 %v74
    %v338 = vunpack.c.l.b16 %v75
    %v339 = vunpack.c.l.b16 %v76
    %v340 = vunpack.c.l.b16 %v77
    %v341 = vunpack.c.l.b16 %v78
    %v342 = vunpack.c.l.b16 %v79
    %v343 = vunpack.c.l.b16 %v80
    %v344 = vunpack.c.l.b16 %v81
    %v345 = vunpack.c.l.b16 %v82
    %v346 = vunpack.c.l.b16 %v83
    %v347 = vunpack.c.l.b16 %v84
    %v348 = vunpack.c.l.b16 %v85
    %v349 = vunpack.c.l.b16 %v86
    %v350 = vunpack.c.l.b16 %v87
    %v351 = vunpack.c.l.b16 %v88
    %v352 = vunpack.c.l.b16 %v89
    %v353 = vunpack.c.l.b16 %v90
    %v354 = vunpack.c.l.b16 %v91
    %v355 = vunpack.c.l.b16 %v92
    %v356 = vunpack.c.l.b16 %v93
    %v357 = vunpack.c.l.b16 %v94
    %v358 = vunpack.c.l.b16 %v95
    %v359 = vunpack.c.l.b16 %v96
    %v360 = vunpack.c.l.b16 %v97
    %v361 = vunpack.c.l.b16 %v98
    %v362 = vunpack.c.l.b16 %v99
    %v363 = vunpack.c.l.b16 %v100
    %v364 = vunpack.c.l.b16 %v101
    %v365 = vunpack.c.l.b16 %v102
    %v366 = vunpack.c.l.b16 %v103
    %v367 = vunpack.c.l.b16 %v104
    %v368 = vunpack.c.l.b16 %v105
    %v369 = vunpack.c.l.b16 %v106
    %v370 = vunpack.c.l.b16 %v107
    %v371 = vunpack.c.l.b16 %v108
    %v372 = vunpack.c.l.b16 %v109
    %v373 = vunpack.c.l.b16 %v110
    %v374 = vunpack.c.l.b16 %v111
    %v375 = vunpack.c.l.b16 %v112
    %v376 = vunpack.c.l.b16 %v113
    %v377 = vunpack.c.l.b16 %v114
    %v378 = vunpack.c.l.b16 %v115
    %v379 = vunpack.c.l.b16 %v116
    %v380 = vunpack.c.l.b16 %v117
    %v381 = vunpack.c.l.b16 %v118
    %v382 = vunpack.c.l.b16 %v119
    %v383 = vunpack.c.l.b16 %v120
    %v384 = vunpack.c.l.b16 %v121
    %v385 = vunpack.c.l.b16 %v122
    %v386 = vunpack.c.l.b16 %v123
    %v387 = vunpack.c.l.b16 %v124
    %v388 = vunpack.c.l.b16 %v125
    %v389 = vunpack.c.l.b16 %v126
    %v390 = vunpack.c.l.b16 %v127
    %v391 = vunpack.c.l.b16 %v128
    %v392 = vunpack.c.l.b16 %v129
    %v393 = vunpack.c.l.b16 %v130
    %v394 = vunpack.c.l.b16 %v131
    %v395 = vunpack.c.l.b16 %v132
    %v396 = vunpack.c.l.b16 %v133
    %v397 = vunpack.c.l.b16 %v134
    %v398 = vunpack.c.l.b16 %v135
    %v399 = vunpack.c.l.b16 %v136
    %v400 = vunpack.c.l.b16 %v137
    %v401 = vunpack.c.l.b16 %v138
    %v402 = vunpack.c.l.b16 %v139
    %v403 = vunpack.c.l.b16 %v140
    %v404 = vunpack.c.l.b16 %v141
    %v405 = vunpack.c.l.b16 %v142
    %v406 = vunpack.c.l.b16 %v143
    %v407 = vunpack.c.l.b16 %v144
    %v408 = vunpack.c.l.b16 %v145
    %v409 = vunpack.c.l.b16 %v146
    %v410 = vunpack.c.l.b16 %v147
    %v411 = vunpack.c.l.b16 %v148
    %v412 = vunpack.c.l.b16 %v149
    %v413 = vunpack.c.l.b16 %v150
    %v414 = vunpack.c.l.b16 %v151
    %v415 = vunpack.c.l.b16 %v152
    %v416 = vunpack.c.l.b16 %v153
    %v417 = vunpack.c.l.b16 %v154
    %v418 = vunpack.c.l.b16 %v155
    %v419 = vunpack.c.l.b16 %v156
    %v420 = vunpack.c.l.b16 %v157
    %v421 = vunpack.c.l.b16 %v158
    %v422 = vunpack.c.l.b16 %v159
    %v423 = vunpack.c.l.b16 %v160
    %v424 = vunpack.c.l.b16 %v161
    %v425 = vunpack.c.l.b16 %v162
    %v426 = vunpack.c.l.b16 %v163
    %v427 = vunpack.c.l.b16 %v164
    %v428 = vunpack.c.l.b16 %v165
    %v429 = vunpack.c.l.b16 %v166
    %v430 = vunpack.c.l.b16 %v167
    %v431 = vunpack.c.l.b16 %v168
    %v432 = vunpack.c.l.b16 %v169
    %v433 = vunpack.c.l.b16 %v170
    %v434 = vunpack.c.l.b16 %v171
    %v435 = vunpack.c.l.b16 %v172
    %v436 = vunpack.c.l.b16 %v173
    %v437 = vunpack.c.l.b16 %v174
    %v438 = vunpack.c.l.b16 %v175
    %v439 = vunpack.c.l.b16 %v176
    %v440 = vunpack.c.l.b16 %v177
    %v441 = vunpack.c.l.b16 %v178
    %v442 = vunpack.c.l.b16 %v179
    %v443 = vunpack.c.l.b16 %v180
    %v444 = vunpack.c.l.b16 %v181
    %v445 = vunpack.c.l.b16 %v182
    %v446 = vunpack.c.l.b16 %v183
    %v447 = vunpack.c.l.b16 %v184
    %v448 = vunpack.c.l.b16 %v185
    %v449 = vunpack.c.l.b16 %v186
    %v450 = vunpack.c.l.b16 %v187
    %v451 = vunpack.c.l.b16 %v188
    %v452 = vunpack.c.l.b16 %v189
    %v453 = vunpack.c.l.b16 %v190
    %v454 = vunpack.c.l.b16 %v191
    %v455 = vunpack.c.l.b16 %v192
    %v456 = vunpack.c.l.b16 %v193
    %v457 = vunpack.c.l.b16 %v194
    %v458 = vunpack.c.l.b16 %v195
    %v459 = vunpack.c.l.b16 %v196
    %v460 = vpack.c.b16 %v333, %v332
    %v461 = vpack.c.b16 %v335, %v334
    %v462 = vpack.c.b16 %v337, %v336
    %v463 = vpack.c.b16 %v339, %v338
    %v464 = vpack.c.b16 %v341, %v340
    %v465 = vpack.c.b16 %v343, %v342
    %v466 = vpack.c.b16 %v345, %v344
    %v467 = vpack.c.b16 %v347, %v346
    %v468 = vpack.c.b16 %v349, %v348
    %v469 = vpack.c.b16 %v351, %v350
    %v470 = vpack.c.b16 %v353, %v352
    %v471 = vpack.c.b16 %v355, %v354
    %v472 = vpack.c.b16 %v357, %v356
    %v473 = vpack.c.b16 %v359, %v358
    %v474 = vpack.c.b16 %v361, %v360
    %v475 = vpack.c.b16 %v363, %v362
    %v476 = vpack.c.b16 %v365, %v364
    %v477 = vpack.c.b16 %v367, %v366
    %v478 = vpack.c.b16 %v369, %v368
    %v479 = vpack.c.b16 %v371, %v370
    %v480 = vpack.c.b16 %v373, %v372
    %v481 = vpack.c.b16 %v375, %v374
    %v482 = vpack.c.b16 %v377, %v376
    %v483 = vpack.c.b16 %v379, %v378
    %v484 = vpack.c.b16 %v381, %v380
    %v485 = vpack.c.b16 %v383, %v382
    %v486 = vpack.c.b16 %v385, %v384
    %v487 = vpack.c.b16 %v387, %v386
    %v488 = vpack.c.b16 %v389, %v388
    %v489 = vpack.c.b16 %v391, %v390
    %v490 = vpack.c.b16 %v393, %v392
    %v491 = vpack.c.b16 %v395, %v394
    %v492 = vpack.c.b16 %v397, %v396
    %v493 = vpack.c.b16 %v399, %v398
    %v494 = vpack.c.b16 %v401, %v400
    %v495 = vpack.c.b16 %v403, %v402
    %v496 = vpack.c.b16 %v405, %v404
    %v497 = vpack.c.b16 %v407, %v406
    %v498 = vpack.c.b16 %v409, %v408
    %v499 = vpack.c.b16 %v411, %v410
    %v500 = vpack.c.b16 %v413, %v412
    %v501 = vpack.c.b16 %v415, %v414
    %v502 = vpack.c.b16 %v417, %v416
    %v503 = vpack.c.b16 %v419, %v418
    %v504 = vpack.c.b16 %v421, %v420
    %v505 = vpack.c.b16 %v423, %v422
    %v506 = vpack.c.b16 %v425, %v424
    %v507 = vpack.c.b16 %v427, %v426
    %v508 = vpack.c.b16 %v429, %v428
    %v509 = vpack.c.b16 %v431, %v430
    %v510 = vpack.c.b16 %v433, %v432
    %v511 = vpack.c.b16 %v435, %v434
    %v512 = vpack.c.b16 %v437, %v436
    %v513 = vpack.c.b16 %v439, %v438
    %v514 = vpack.c.b16 %v441, %v440
    %v515 = vpack.c.b16 %v443, %v442
    %v516 = vpack.c.b16 %v445, %v444
    %v517 = vpack.c.b16 %v447, %v446
    %v518 = vpack.c.b16 %v449, %v448
    %v519 = vpack.c.b16 %v451, %v450
    %v520 = vpack.c.b16 %v453, %v452
    %v521 = vpack.c.b16 %v455, %v454
    %v522 = vpack.c.b16 %v457, %v456
    %v523 = vpack.c.b16 %v459, %v458
    %588 = vmatprep.subr.bf16.mxu0 0
    %589 = vmatpush1.bf16.msra.mxu0 %v460
    %590 = vmatprep.subr.bf16.mxu0 0
    %591 = vmatpush1.bf16.msra.mxu0 %v461
    %592 = vmatprep.subr.bf16.mxu0 0
    %593 = vmatpush1.bf16.msra.mxu0 %v462
    %594 = vmatprep.subr.bf16.mxu0 0
    %595 = vmatpush1.bf16.msra.mxu0 %v463
    %596 = vmatprep.subr.bf16.mxu0 0
    %597 = vmatpush1.bf16.msra.mxu0 %v464
    %598 = vmatprep.subr.bf16.mxu0 0
    %599 = vmatpush1.bf16.msra.mxu0 %v465
    %600 = vmatprep.subr.bf16.mxu0 0
    %601 = vmatpush1.bf16.msra.mxu0 %v466
    %602 = vmatprep.subr.bf16.mxu0 0
    %603 = vmatpush1.bf16.msra.mxu0 %v467
    %604 = vmatprep.subr.bf16.mxu0 0
    %605 = vmatpush1.bf16.msra.mxu0 %v468
    %606 = vmatprep.subr.bf16.mxu0 0
    %607 = vmatpush1.bf16.msra.mxu0 %v469
    %608 = vmatprep.subr.bf16.mxu0 0
    %609 = vmatpush1.bf16.msra.mxu0 %v470
    %610 = vmatprep.subr.bf16.mxu0 0
    %611 = vmatpush1.bf16.msra.mxu0 %v471
    %612 = vmatprep.subr.bf16.mxu0 0
    %613 = vmatpush1.bf16.msra.mxu0 %v472
    %614 = vmatprep.subr.bf16.mxu0 0
    %615 = vmatpush1.bf16.msra.mxu0 %v473
    %616 = vmatprep.subr.bf16.mxu0 0
    %617 = vmatpush1.bf16.msra.mxu0 %v474
    %618 = vmatprep.subr.bf16.mxu0 0
    %619 = vmatpush1.bf16.msra.mxu0 %v475
    %620 = vmatprep.mubr.bf16.mxu0 %v62
    %621 = vmatmul.mubr.bf16.gmra.mrb[0].mxu0 %v61
    %v622 = vpop.f32.mrb[0].mxu0
    %v623 = vadd.f32 %v202, %v622
    %v624 = vpop.f32.mrb[0].mxu0
    %v625 = vpop.f32.mrb[0].mxu0
    %v626 = vpop.f32.mrb[0].mxu0
    %627 = vdwg.mxu0
    %628 = vmatprep.subr.bf16.mxu0 0
    %629 = vmatpush1.bf16.msra.mxu0 %v476
    %630 = vmatprep.subr.bf16.mxu0 0
    %631 = vmatpush1.bf16.msra.mxu0 %v477
    %632 = vmatprep.subr.bf16.mxu0 0
    %633 = vmatpush1.bf16.msra.mxu0 %v478
    %634 = vmatprep.subr.bf16.mxu0 0
    %635 = vmatpush1.bf16.msra.mxu0 %v479
    %636 = vmatprep.subr.bf16.mxu0 0
    %637 = vmatpush1.bf16.msra.mxu0 %v480
    %638 = vmatprep.subr.bf16.mxu0 0
    %639 = vmatpush1.bf16.msra.mxu0 %v481
    %640 = vmatprep.subr.bf16.mxu0 0
    %641 = vmatpush1.bf16.msra.mxu0 %v482
    %642 = vmatprep.subr.bf16.mxu0 0
    %643 = vmatpush1.bf16.msra.mxu0 %v483
    %644 = vmatprep.subr.bf16.mxu0 0
    %645 = vmatpush1.bf16.msra.mxu0 %v484
    %646 = vmatprep.subr.bf16.mxu0 0
    %647 = vmatpush1.bf16.msra.mxu0 %v485
    %648 = vmatprep.subr.bf16.mxu0 0
    %649 = vmatpush1.bf16.msra.mxu0 %v486
    %650 = vmatprep.subr.bf16.mxu0 0
    %651 = vmatpush1.bf16.msra.mxu0 %v487
    %652 = vmatprep.subr.bf16.mxu0 0
    %653 = vmatpush1.bf16.msra.mxu0 %v488
    %654 = vmatprep.subr.bf16.mxu0 0
    %655 = vmatpush1.bf16.msra.mxu0 %v489
    %656 = vmatprep.subr.bf16.mxu0 0
    %657 = vmatpush1.bf16.msra.mxu0 %v490
    %658 = vmatprep.subr.bf16.mxu0 0
    %659 = vmatpush1.bf16.msra.mxu0 %v491
    %660 = vmatprep.mubr.bf16.mxu0 %v64
    %661 = vmatmul.mubr.bf16.gmra.mrb[0].mxu0 %v63
    %v662 = vpop.f32.mrb[0].mxu0
    %v663 = vadd.f32 %v623, %v662
    %v664 = vpop.f32.mrb[0].mxu0
    %v665 = vpop.f32.mrb[0].mxu0
    %v666 = vpop.f32.mrb[0].mxu0
    %667 = vdwg.mxu0
    %668 = vmatprep.subr.bf16.mxu0 0
    %669 = vmatpush1.bf16.msra.mxu0 %v492
    %670 = vmatprep.subr.bf16.mxu0 0
    %671 = vmatpush1.bf16.msra.mxu0 %v493
    %672 = vmatprep.subr.bf16.mxu0 0
    %673 = vmatpush1.bf16.msra.mxu0 %v494
    %674 = vmatprep.subr.bf16.mxu0 0
    %675 = vmatpush1.bf16.msra.mxu0 %v495
    %676 = vmatprep.subr.bf16.mxu0 0
    %677 = vmatpush1.bf16.msra.mxu0 %v496
    %678 = vmatprep.subr.bf16.mxu0 0
    %679 = vmatpush1.bf16.msra.mxu0 %v497
    %680 = vmatprep.subr.bf16.mxu0 0
    %681 = vmatpush1.bf16.msra.mxu0 %v498
    %682 = vmatprep.subr.bf16.mxu0 0
    %683 = vmatpush1.bf16.msra.mxu0 %v499
    %684 = vmatprep.subr.bf16.mxu0 0
    %685 = vmatpush1.bf16.msra.mxu0 %v500
    %686 = vmatprep.subr.bf16.mxu0 0
    %687 = vmatpush1.bf16.msra.mxu0 %v501
    %688 = vmatprep.subr.bf16.mxu0 0
    %689 = vmatpush1.bf16.msra.mxu0 %v502
    %690 = vmatprep.subr.bf16.mxu0 0
    %691 = vmatpush1.bf16.msra.mxu0 %v503
    %692 = vmatprep.subr.bf16.mxu0 0
    %693 = vmatpush1.bf16.msra.mxu0 %v504
    %694 = vmatprep.subr.bf16.mxu0 0
    %695 = vmatpush1.bf16.msra.mxu0 %v505
    %696 = vmatprep.subr.bf16.mxu0 0
    %697 = vmatpush1.bf16.msra.mxu0 %v506
    %698 = vmatprep.subr.bf16.mxu0 0
    %699 = vmatpush1.bf16.msra.mxu0 %v507
    %700 = vmatprep.mubr.bf16.mxu0 %v66
    %701 = vmatmul.mubr.bf16.gmra.mrb[0].mxu0 %v65
    %v702 = vpop.f32.mrb[0].mxu0
    %v703 = vadd.f32 %v663, %v702
    %v704 = vpop.f32.mrb[0].mxu0
    %v705 = vpop.f32.mrb[0].mxu0
    %v706 = vpop.f32.mrb[0].mxu0
    %707 = vdwg.mxu0
    %708 = vmatprep.subr.bf16.mxu0 0
    %709 = vmatpush1.bf16.msra.mxu0 %v508
    %710 = vmatprep.subr.bf16.mxu0 0
    %711 = vmatpush1.bf16.msra.mxu0 %v509
    %712 = vmatprep.subr.bf16.mxu0 0
    %713 = vmatpush1.bf16.msra.mxu0 %v510
    %714 = vmatprep.subr.bf16.mxu0 0
    %715 = vmatpush1.bf16.msra.mxu0 %v511
    %716 = vmatprep.subr.bf16.mxu0 0
    %717 = vmatpush1.bf16.msra.mxu0 %v512
    %718 = vmatprep.subr.bf16.mxu0 0
    %719 = vmatpush1.bf16.msra.mxu0 %v513
    %720 = vmatprep.subr.bf16.mxu0 0
    %721 = vmatpush1.bf16.msra.mxu0 %v514
    %722 = vmatprep.subr.bf16.mxu0 0
    %723 = vmatpush1.bf16.msra.mxu0 %v515
    %724 = vmatprep.subr.bf16.mxu0 0
    %725 = vmatpush1.bf16.msra.mxu0 %v516
    %726 = vmatprep.subr.bf16.mxu0 0
    %727 = vmatpush1.bf16.msra.mxu0 %v517
    %728 = vmatprep.subr.bf16.mxu0 0
    %729 = vmatpush1.bf16.msra.mxu0 %v518
    %730 = vmatprep.subr.bf16.mxu0 0
    %731 = vmatpush1.bf16.msra.mxu0 %v519
    %732 = vmatprep.subr.bf16.mxu0 0
    %733 = vmatpush1.bf16.msra.mxu0 %v520
    %734 = vmatprep.subr.bf16.mxu0 0
    %735 = vmatpush1.bf16.msra.mxu0 %v521
    %736 = vmatprep.subr.bf16.mxu0 0
    %737 = vmatpush1.bf16.msra.mxu0 %v522
    %738 = vmatprep.subr.bf16.mxu0 0
    %739 = vmatpush1.bf16.msra.mxu0 %v523
    %740 = vmatprep.mubr.bf16.mxu0 %v68
    %741 = vmatmul.mubr.bf16.gmra.mrb[0].mxu0 %v67
    %v742 = vpop.f32.mrb[0].mxu0
    %v743 = vadd.f32 %v703, %v742
    %v744 = vpop.f32.mrb[0].mxu0
    %v745 = vpop.f32.mrb[0].mxu0
    %v746 = vpop.f32.mrb[0].mxu0
    %747 = vdwg.mxu0
    %748 = vst [vmem:[#allocation8] sm:$0xff] %v743
    // Predicated region
    $region26: #{pallas_linear.1} parent=1 // pred_check
      _
    $region27: #{pallas_linear.1} parent=1 // pred_check_branch
      %750 = sbr.rel (0) target = $region29
    $region28: #{pallas_linear.1} parent=1 // pred_region
      %s752 = ssub.s32 128, 128
      %753 = vsyncadd [#allocation4], %s752
      %s755 = sshll.u32 [#allocation8], 4
      %s756 = int_to_ptr.vmem [resolvable:$true] %s755
      %758 = dma.vmem_to_hbm [thread:$0]  %s756, 128, %s3, [#allocation4]
    $region29: #{pallas_linear.1} parent=1 // pred_fallthru
      _
    // Predicated region
    $region30: #{pallas_linear.1} parent=1 // pred_check
      _
    $region31: #{pallas_linear.1} parent=1 // pred_check_branch
      %760 = sbr.rel (0) target = $region33
    $region32: #{pallas_linear.1} parent=1 // pred_region
      %761 = dma.done [#allocation4], 128
    $region33: #{pallas_linear.1} parent=1 // pred_fallthru
      _
    %762 = vsyncpa [#allocation3], 1
    %763 = vsyncpa [#allocation6], 1
    %764 = vsyncpa [#allocation4], 1

</llo_original>
